<compile_context>
chip_gen: v7x
topology: tpu7x:2x2x1
jax: 0.10.0
libtpu: 0.0.40
codegen_flags: <defaults>
</compile_context>

<pallas_src>
import functools

import jax
import jax.numpy as jnp
from jax import lax
from jax.experimental import pallas as pl
from jax.experimental.pallas import tpu as pltpu


def _round_up(x, m):
    return (x + m - 1) // m * m


def _bert_output_kernel(h_ref, x_ref, w_ref, b_ref, g_ref, beta_ref, o_ref,
                        *, eps, matmul_dtype):
    # In-kernel cast to the MXU-peak dtype (no-op if the input already arrives
    # in matmul_dtype); f32 accumulation on the MXU.
    h = h_ref[...]
    if h.dtype != matmul_dtype:
        h = h.astype(matmul_dtype)
    y = jnp.dot(h, w_ref[...], preferred_element_type=jnp.float32)

    # TODO(synk): dropout is identity here (inference semantics); training-mode
    # dropout needs pltpu.prng_seed/prng_random_bits + keep-mask + 1/(1-p) scale.

    # bias + residual add, all in f32
    z = y + b_ref[...] + x_ref[...].astype(jnp.float32)

    # TF-style LayerNorm over the hidden (lane) axis, two-pass statistics
    # (matches the PyTorch module and avoids E[z^2]-E[z]^2 cancellation).
    u = jnp.mean(z, axis=-1, keepdims=True)
    c = z - u
    var = jnp.mean(c * c, axis=-1, keepdims=True)
    zn = c * lax.rsqrt(var + eps)                 # rsqrt -> EUP slot, VPU stays free
    o_ref[...] = (g_ref[...] * zn + beta_ref[...]).astype(o_ref.dtype)


def bert_output(hidden_states, input_tensor, w, b, gamma, beta,
                *, eps=1e-12, row_block=None, matmul_dtype=jnp.bfloat16,
                out_dtype=None):
    """hidden_states: [B, S, I], input_tensor: [B, S, H], w: [I, H] (Linear.weight.T)."""
    B, S, I = hidden_states.shape
    H = input_tensor.shape[-1]
    rows = B * S
    out_dtype = input_tensor.dtype if out_dtype is None else out_dtype

    # No wrapper-side astype of the activations (HBM round-trip); cast in-kernel.
    h2 = hidden_states.reshape(rows, I)
    x2 = input_tensor.reshape(rows, H)
    # Weight: cast only if needed (prefer pre-casting once at model setup).
    w_c = w if w.dtype == matmul_dtype else w.astype(matmul_dtype)
    b2 = b.reshape(1, H).astype(jnp.float32)
    g2 = gamma.reshape(1, H).astype(jnp.float32)
    bt2 = beta.reshape(1, H).astype(jnp.float32)

    isz = lambda dt: jnp.dtype(dt).itemsize

    # Per-generation VMEM budget (v5e/v6e: 128 MiB, v7x: 64 MiB physical).
    try:
        vmem_cap = int(pltpu.get_tpu_info().vmem_capacity_bytes)
    except Exception:
        vmem_cap = 64 * 1024 * 1024            # conservative (v7x) fallback
    vmem_budget = int(0.85 * vmem_cap)

    def footprint(rb, invariant_bufs):
        return (
            2 * rb * I * isz(h2.dtype)               # double-buffered hidden tiles
            + rb * I * isz(matmul_dtype)             # in-kernel bf16 cast of the tile
            + 2 * rb * H * isz(x2.dtype)             # double-buffered residual tiles
            + 2 * rb * H * isz(out_dtype)            # double-buffered output tiles
            + invariant_bufs * I * H * isz(matmul_dtype)   # resident dense weight
            + invariant_bufs * 3 * H * 4             # bias / gamma / beta
            + 4 * rb * H * 4                         # LayerNorm f32 temporaries
        )

    rows8 = _round_up(rows, 8)
    if row_block is None:
        rb = 512
        while rb > 8 and footprint(rb, 1) > vmem_budget:
            rb //= 2
        rb = max(rb, 8)
    else:
        rb = max(8, _round_up(row_block, 8))
    rb = min(rb, rows8)
    # Keep >= 4 grid steps (>= 2 per TensorCore on v7x megacore) when data allows.
    if rows8 // rb < 4 and rows8 >= 4 * 8:
        rb = max(8, _round_up(pl.cdiv(rows8, 4), 8))

    grid = (pl.cdiv(rows, rb),)

    # VMEM limit sized from the real footprint (conservatively assume the fallback
    # double-buffers invariants), clamped to the per-generation budget.
    vmem_limit = int(min(max(int(1.2 * footprint(rb, 2)), 32 * 1024 * 1024),
                         vmem_budget))

    cost = pl.CostEstimate(
        flops=2 * rows * I * H + 10 * rows * H,
        transcendentals=rows,                        # one rsqrt per row
        bytes_accessed=(rows * I * isz(h2.dtype) + rows * H * isz(x2.dtype)
                        + I * H * isz(matmul_dtype) + 3 * H * 4
                        + rows * H * isz(out_dtype)),
    )

    def build(single_buffer_invariants):
        if single_buffer_invariants:
            inv = lambda shape, idx: pl.BlockSpec(shape, idx,
                                                  pipeline_mode=pl.Buffered(1))
        else:
            inv = lambda shape, idx: pl.BlockSpec(shape, idx)
        return pl.pallas_call(
            functools.partial(_bert_output_kernel, eps=eps, matmul_dtype=matmul_dtype),
            out_shape=jax.ShapeDtypeStruct((rows, H), out_dtype),
            grid_spec=pltpu.PrefetchScalarGridSpec(
                num_scalar_prefetch=0,
                grid=grid,
                in_specs=[
                    pl.BlockSpec((rb, I), lambda i: (i, 0)),   # hidden_states tile
                    pl.BlockSpec((rb, H), lambda i: (i, 0)),   # residual tile
                    inv((I, H), lambda i: (0, 0)),             # dense weight (resident)
                    inv((1, H), lambda i: (0, 0)),             # dense bias (f32)
                    inv((1, H), lambda i: (0, 0)),             # LN gamma (f32)
                    inv((1, H), lambda i: (0, 0)),             # LN beta (f32)
                ],
                out_specs=pl.BlockSpec((rb, H), lambda i: (i, 0)),
            ),
            compiler_params=pltpu.CompilerParams(
                dimension_semantics=("parallel",),
                vmem_limit_bytes=vmem_limit,
            ),
            cost_estimate=cost,
        )

    try:
        out = build(True)(h2, x2, w_c, b2, g2, bt2)
    except Exception:
        # Fallback if this JAX build rejects pipeline_mode=pl.Buffered(1).
        out = build(False)(h2, x2, w_c, b2, g2, bt2)

    return out.reshape(B, S, H)


def _reference_f32(hidden_states, input_tensor, w, b, gamma, beta, eps=1e-12):
    # Exact module semantics in f32.
    y = jnp.einsum("bsi,ih->bsh", hidden_states, w) + b
    z = y + input_tensor
    u = jnp.mean(z, axis=-1, keepdims=True)
    s = jnp.mean((z - u) ** 2, axis=-1, keepdims=True)
    zn = (z - u) / jnp.sqrt(s + eps)
    return gamma * zn + beta


def _reference_mixed(hidden_states, input_tensor, w, b, gamma, beta, eps=1e-12,
                     matmul_dtype=jnp.bfloat16):
    # Same math, matmul at the kernel's precision (bf16 inputs, f32 accumulation).
    y = jnp.einsum("bsi,ih->bsh",
                   hidden_states.astype(matmul_dtype), w.astype(matmul_dtype),
                   preferred_element_type=jnp.float32) + b
    z = y + input_tensor
    u = jnp.mean(z, axis=-1, keepdims=True)
    s = jnp.mean((z - u) ** 2, axis=-1, keepdims=True)
    zn = (z - u) / jnp.sqrt(s + eps)
    return gamma * zn + beta


if __name__ == "__main__":
    # config: intermediate_size=512, hidden_size=128, batch=2, seq=8
    B, S, H, I = 2, 8, 128, 512
    eps = 1e-12

    key = jax.random.PRNGKey(0)
    k1, k2, k3, k4, k5, k6 = jax.random.split(key, 6)

    hidden_states = jax.random.normal(k1, (B, S, I), dtype=jnp.float32)
    input_tensor = jax.random.normal(k2, (B, S, H), dtype=jnp.float32)

    # dense: Linear(I -> H); weight stored as [I, H] for row-major matmul
    w = jax.random.normal(k3, (I, H), dtype=jnp.float32) * 0.02
    b = jax.random.normal(k4, (H,), dtype=jnp.float32) * 0.02
    # LayerNorm params (init ones/zeros per module, perturbed deterministically)
    gamma = jnp.ones((H,), dtype=jnp.float32) + 0.1 * jax.random.normal(k5, (H,))
    beta = jnp.zeros((H,), dtype=jnp.float32) + 0.1 * jax.random.normal(k6, (H,))

    out = bert_output(hidden_states, input_tensor, w, b, gamma, beta, eps=eps)
    out = jax.block_until_ready(out)
    assert out.shape == (B, S, H)

    ref_mixed = _reference_mixed(hidden_states, input_tensor, w, b, gamma, beta, eps=eps)
    ref_f32 = _reference_f32(hidden_states, input_tensor, w, b, gamma, beta, eps=eps)
    assert jnp.allclose(out, ref_mixed, atol=1e-3, rtol=1e-3), \
        "mismatch vs precision-matched reference"
    assert jnp.allclose(out, ref_f32, atol=2e-2, rtol=2e-2), \
        "mismatch vs f32 module reference"

    print("KERNEL_OK")
</pallas_src>

<mosaic_0001>
module attributes {stable_mosaic.version = 11 : i64} {
  func.func @_bert_output_kernel(%arg0: i32, %arg1: memref<16x512xf32, #tpu.memory_space<vmem>>, %arg2: memref<16x128xf32, #tpu.memory_space<vmem>>, %arg3: memref<512x128xbf16, #tpu.memory_space<vmem>>, %arg4: memref<1x128xf32, #tpu.memory_space<vmem>>, %arg5: memref<1x128xf32, #tpu.memory_space<vmem>>, %arg6: memref<1x128xf32, #tpu.memory_space<vmem>>, %arg7: memref<16x128xf32, #tpu.memory_space<vmem>>) attributes {dimension_semantics = [#tpu.dimension_semantics<parallel>], iteration_bounds = array<i64: 1>, scalar_prefetch = 0 : i64, scratch_operands = 0 : i64, tpu.core_type = #tpu.core_type<tc>, window_params = [{transform_indices = @transform_0, window_bounds = array<i64: 16, 512>}, {transform_indices = @transform_1, window_bounds = array<i64: 16, 128>}, {pipeline_mode = #tpu.pipeline_mode<synchronous>, transform_indices = @transform_2, window_bounds = array<i64: 512, 128>}, {pipeline_mode = #tpu.pipeline_mode<synchronous>, transform_indices = @transform_3, window_bounds = array<i64: 1, 128>}, {pipeline_mode = #tpu.pipeline_mode<synchronous>, transform_indices = @transform_4, window_bounds = array<i64: 1, 128>}, {pipeline_mode = #tpu.pipeline_mode<synchronous>, transform_indices = @transform_5, window_bounds = array<i64: 1, 128>}, {transform_indices = @transform_6, window_bounds = array<i64: 16, 128>}]} {
    %c0 = arith.constant 0 : index
    %c0_0 = arith.constant 0 : index
    %0 = vector.load %arg1[%c0, %c0_0] : memref<16x512xf32, #tpu.memory_space<vmem>>, vector<16x512xf32>
    %1 = arith.truncf %0 : vector<16x512xf32> to vector<16x512xbf16>
    %c0_1 = arith.constant 0 : index
    %c0_2 = arith.constant 0 : index
    %2 = vector.load %arg3[%c0_1, %c0_2] : memref<512x128xbf16, #tpu.memory_space<vmem>>, vector<512x128xbf16>
    %cst = arith.constant dense<0.000000e+00> : vector<16x128xf32>
    %3 = tpu.matmul %1, %2, %cst {dimension_numbers = #tpu.dot_dimension_numbers<[1], [0], [0], [1], [0, 0, 1, 1], [], []>} : vector<16x512xbf16>, vector<512x128xbf16>, vector<16x128xf32> -> vector<16x128xf32>
    %c0_3 = arith.constant 0 : index
    %c0_4 = arith.constant 0 : index
    %4 = vector.load %arg4[%c0_3, %c0_4] : memref<1x128xf32, #tpu.memory_space<vmem>>, vector<1x128xf32>
    %5 = vector.broadcast %4 : vector<1x128xf32> to vector<16x128xf32>
    %6 = arith.addf %3, %5 : vector<16x128xf32>
    %c0_5 = arith.constant 0 : index
    %c0_6 = arith.constant 0 : index
    %7 = vector.load %arg2[%c0_5, %c0_6] : memref<16x128xf32, #tpu.memory_space<vmem>>, vector<16x128xf32>
    %8 = arith.addf %6, %7 : vector<16x128xf32>
    %cst_7 = arith.constant dense<0.000000e+00> : vector<16xf32>
    %9 = vector.multi_reduction <add>, %8, %cst_7 [1] : vector<16x128xf32> to vector<16xf32>
    %10 = vector.shape_cast %9 : vector<16xf32> to vector<16x1xf32>
    %cst_8 = arith.constant 1.280000e+02 : f32
    %11 = vector.broadcast %cst_8 : f32 to vector<16x1xf32>
    %12 = arith.divf %10, %11 : vector<16x1xf32>
    %13 = vector.broadcast %12 : vector<16x1xf32> to vector<16x128xf32>
    %14 = arith.subf %8, %13 : vector<16x128xf32>
    %15 = arith.mulf %14, %14 : vector<16x128xf32>
    %cst_9 = arith.constant dense<0.000000e+00> : vector<16xf32>
    %16 = vector.multi_reduction <add>, %15, %cst_9 [1] : vector<16x128xf32> to vector<16xf32>
    %17 = vector.shape_cast %16 : vector<16xf32> to vector<16x1xf32>
    %cst_10 = arith.constant 1.280000e+02 : f32
    %18 = vector.broadcast %cst_10 : f32 to vector<16x1xf32>
    %19 = arith.divf %17, %18 : vector<16x1xf32>
    %cst_11 = arith.constant 9.99999996E-13 : f32
    %20 = vector.broadcast %cst_11 : f32 to vector<16x1xf32>
    %21 = arith.addf %19, %20 : vector<16x1xf32>
    %22 = math.rsqrt %21 : vector<16x1xf32>
    %23 = vector.broadcast %22 : vector<16x1xf32> to vector<16x128xf32>
    %24 = arith.mulf %14, %23 : vector<16x128xf32>
    %c0_12 = arith.constant 0 : index
    %c0_13 = arith.constant 0 : index
    %25 = vector.load %arg5[%c0_12, %c0_13] : memref<1x128xf32, #tpu.memory_space<vmem>>, vector<1x128xf32>
    %26 = vector.broadcast %25 : vector<1x128xf32> to vector<16x128xf32>
    %27 = arith.mulf %26, %24 : vector<16x128xf32>
    %c0_14 = arith.constant 0 : index
    %c0_15 = arith.constant 0 : index
    %28 = vector.load %arg6[%c0_14, %c0_15] : memref<1x128xf32, #tpu.memory_space<vmem>>, vector<1x128xf32>
    %29 = vector.broadcast %28 : vector<1x128xf32> to vector<16x128xf32>
    %30 = arith.addf %27, %29 : vector<16x128xf32>
    %c0_16 = arith.constant 0 : index
    %c0_17 = arith.constant 0 : index
    %31 = vector.load %arg7[%c0_16, %c0_17] : memref<16x128xf32, #tpu.memory_space<vmem>>, vector<16x128xf32>
    tpu.vector_store %arg7[%c0_16, %c0_17], %30 {strides = array<i32>} : memref<16x128xf32, #tpu.memory_space<vmem>>, vector<16x128xf32>,
    return
  }
  func.func @transform_0(%arg0: i32) -> (i32, i32) {
    %c0_i32 = arith.constant 0 : i32
    %c0_i32_0 = arith.constant 0 : i32
    return %arg0, %c0_i32 : i32, i32
  }
  func.func @transform_1(%arg0: i32) -> (i32, i32) {
    %c0_i32 = arith.constant 0 : i32
    %c0_i32_0 = arith.constant 0 : i32
    return %arg0, %c0_i32 : i32, i32
  }
  func.func @transform_2(%arg0: i32) -> (i32, i32) {
    %c0_i32 = arith.constant 0 : i32
    %c0_i32_0 = arith.constant 0 : i32
    %c0_i32_1 = arith.constant 0 : i32
    return %c0_i32, %c0_i32_0 : i32, i32
  }
  func.func @transform_3(%arg0: i32) -> (i32, i32) {
    %c0_i32 = arith.constant 0 : i32
    %c0_i32_0 = arith.constant 0 : i32
    %c0_i32_1 = arith.constant 0 : i32
    return %c0_i32, %c0_i32_0 : i32, i32
  }
  func.func @transform_4(%arg0: i32) -> (i32, i32) {
    %c0_i32 = arith.constant 0 : i32
    %c0_i32_0 = arith.constant 0 : i32
    %c0_i32_1 = arith.constant 0 : i32
    return %c0_i32, %c0_i32_0 : i32, i32
  }
  func.func @transform_5(%arg0: i32) -> (i32, i32) {
    %c0_i32 = arith.constant 0 : i32
    %c0_i32_0 = arith.constant 0 : i32
    %c0_i32_1 = arith.constant 0 : i32
    return %c0_i32, %c0_i32_0 : i32, i32
  }
  func.func @transform_6(%arg0: i32) -> (i32, i32) {
    %c0_i32 = arith.constant 0 : i32
    %c0_i32_0 = arith.constant 0 : i32
    return %arg0, %c0_i32 : i32, i32
  }
}

module attributes {stable_mosaic.version = 11 : i64} {
  func.func @_bert_output_kernel(%arg0: i32, %arg1: memref<16x512xf32, #tpu.memory_space<vmem>>, %arg2: memref<16x128xf32, #tpu.memory_space<vmem>>, %arg3: memref<512x128xbf16, #tpu.memory_space<vmem>>, %arg4: memref<1x128xf32, #tpu.memory_space<vmem>>, %arg5: memref<1x128xf32, #tpu.memory_space<vmem>>, %arg6: memref<1x128xf32, #tpu.memory_space<vmem>>, %arg7: memref<16x128xf32, #tpu.memory_space<vmem>>) attributes {dimension_semantics = [#tpu.dimension_semantics<parallel>], iteration_bounds = array<i64: 1>, scalar_prefetch = 0 : i64, scratch_operands = 0 : i64, tpu.core_type = #tpu.core_type<tc>, window_params = [{transform_indices = @transform_0, window_bounds = array<i64: 16, 512>}, {transform_indices = @transform_1, window_bounds = array<i64: 16, 128>}, {pipeline_mode = #tpu.pipeline_mode<synchronous>, transform_indices = @transform_2, window_bounds = array<i64: 512, 128>}, {pipeline_mode = #tpu.pipeline_mode<synchronous>, transform_indices = @transform_3, window_bounds = array<i64: 1, 128>}, {pipeline_mode = #tpu.pipeline_mode<synchronous>, transform_indices = @transform_4, window_bounds = array<i64: 1, 128>}, {pipeline_mode = #tpu.pipeline_mode<synchronous>, transform_indices = @transform_5, window_bounds = array<i64: 1, 128>}, {transform_indices = @transform_6, window_bounds = array<i64: 16, 128>}]} {
    %c0 = arith.constant 0 : index
    %c0_0 = arith.constant 0 : index
    %0 = vector.load %arg1[%c0, %c0_0] : memref<16x512xf32, #tpu.memory_space<vmem>>, vector<16x512xf32>
    %1 = arith.truncf %0 : vector<16x512xf32> to vector<16x512xbf16>
    %c0_1 = arith.constant 0 : index
    %c0_2 = arith.constant 0 : index
    %2 = vector.load %arg3[%c0_1, %c0_2] : memref<512x128xbf16, #tpu.memory_space<vmem>>, vector<512x128xbf16>
    %cst = arith.constant dense<0.000000e+00> : vector<16x128xf32>
    %3 = tpu.matmul %1, %2, %cst {dimension_numbers = #tpu.dot_dimension_numbers<[1], [0], [0], [1], [0, 0, 1, 1], [], []>} : vector<16x512xbf16>, vector<512x128xbf16>, vector<16x128xf32> -> vector<16x128xf32>
    %c0_3 = arith.constant 0 : index
    %c0_4 = arith.constant 0 : index
    %4 = vector.load %arg4[%c0_3, %c0_4] : memref<1x128xf32, #tpu.memory_space<vmem>>, vector<1x128xf32>
    %5 = vector.broadcast %4 : vector<1x128xf32> to vector<16x128xf32>
    %6 = arith.addf %3, %5 : vector<16x128xf32>
    %c0_5 = arith.constant 0 : index
    %c0_6 = arith.constant 0 : index
    %7 = vector.load %arg2[%c0_5, %c0_6] : memref<16x128xf32, #tpu.memory_space<vmem>>, vector<16x128xf32>
    %8 = arith.addf %6, %7 : vector<16x128xf32>
    %cst_7 = arith.constant dense<0.000000e+00> : vector<16xf32>
    %9 = vector.multi_reduction <add>, %8, %cst_7 [1] : vector<16x128xf32> to vector<16xf32>
    %10 = vector.shape_cast %9 : vector<16xf32> to vector<16x1xf32>
    %cst_8 = arith.constant 1.280000e+02 : f32
    %11 = vector.broadcast %cst_8 : f32 to vector<16x1xf32>
    %12 = arith.divf %10, %11 : vector<16x1xf32>
    %13 = vector.broadcast %12 : vector<16x1xf32> to vector<16x128xf32>
    %14 = arith.subf %8, %13 : vector<16x128xf32>
    %15 = arith.mulf %14, %14 : vector<16x128xf32>
    %cst_9 = arith.constant dense<0.000000e+00> : vector<16xf32>
    %16 = vector.multi_reduction <add>, %15, %cst_9 [1] : vector<16x128xf32> to vector<16xf32>
    %17 = vector.shape_cast %16 : vector<16xf32> to vector<16x1xf32>
    %cst_10 = arith.constant 1.280000e+02 : f32
    %18 = vector.broadcast %cst_10 : f32 to vector<16x1xf32>
    %19 = arith.divf %17, %18 : vector<16x1xf32>
    %cst_11 = arith.constant 9.99999996E-13 : f32
    %20 = vector.broadcast %cst_11 : f32 to vector<16x1xf32>
    %21 = arith.addf %19, %20 : vector<16x1xf32>
    %22 = math.rsqrt %21 : vector<16x1xf32>
    %23 = vector.broadcast %22 : vector<16x1xf32> to vector<16x128xf32>
    %24 = arith.mulf %14, %23 : vector<16x128xf32>
    %c0_12 = arith.constant 0 : index
    %c0_13 = arith.constant 0 : index
    %25 = vector.load %arg5[%c0_12, %c0_13] : memref<1x128xf32, #tpu.memory_space<vmem>>, vector<1x128xf32>
    %26 = vector.broadcast %25 : vector<1x128xf32> to vector<16x128xf32>
    %27 = arith.mulf %26, %24 : vector<16x128xf32>
    %c0_14 = arith.constant 0 : index
    %c0_15 = arith.constant 0 : index
    %28 = vector.load %arg6[%c0_14, %c0_15] : memref<1x128xf32, #tpu.memory_space<vmem>>, vector<1x128xf32>
    %29 = vector.broadcast %28 : vector<1x128xf32> to vector<16x128xf32>
    %30 = arith.addf %27, %29 : vector<16x128xf32>
    %c0_16 = arith.constant 0 : index
    %c0_17 = arith.constant 0 : index
    %31 = vector.load %arg7[%c0_16, %c0_17] : memref<16x128xf32, #tpu.memory_space<vmem>>, vector<16x128xf32>
    tpu.vector_store %arg7[%c0_16, %c0_17], %30 {strides = array<i32>} : memref<16x128xf32, #tpu.memory_space<vmem>>, vector<16x128xf32>,
    return
  }
  func.func @transform_0(%arg0: i32) -> (i32, i32) {
    %c0_i32 = arith.constant 0 : i32
    %c0_i32_0 = arith.constant 0 : i32
    return %arg0, %c0_i32 : i32, i32
  }
  func.func @transform_1(%arg0: i32) -> (i32, i32) {
    %c0_i32 = arith.constant 0 : i32
    %c0_i32_0 = arith.constant 0 : i32
    return %arg0, %c0_i32 : i32, i32
  }
  func.func @transform_2(%arg0: i32) -> (i32, i32) {
    %c0_i32 = arith.constant 0 : i32
    %c0_i32_0 = arith.constant 0 : i32
    %c0_i32_1 = arith.constant 0 : i32
    return %c0_i32, %c0_i32_0 : i32, i32
  }
  func.func @transform_3(%arg0: i32) -> (i32, i32) {
    %c0_i32 = arith.constant 0 : i32
    %c0_i32_0 = arith.constant 0 : i32
    %c0_i32_1 = arith.constant 0 : i32
    return %c0_i32, %c0_i32_0 : i32, i32
  }
  func.func @transform_4(%arg0: i32) -> (i32, i32) {
    %c0_i32 = arith.constant 0 : i32
    %c0_i32_0 = arith.constant 0 : i32
    %c0_i32_1 = arith.constant 0 : i32
    return %c0_i32, %c0_i32_0 : i32, i32
  }
  func.func @transform_5(%arg0: i32) -> (i32, i32) {
    %c0_i32 = arith.constant 0 : i32
    %c0_i32_0 = arith.constant 0 : i32
    %c0_i32_1 = arith.constant 0 : i32
    return %c0_i32, %c0_i32_0 : i32, i32
  }
  func.func @transform_6(%arg0: i32) -> (i32, i32) {
    %c0_i32 = arith.constant 0 : i32
    %c0_i32_0 = arith.constant 0 : i32
    return %arg0, %c0_i32 : i32, i32
  }
}

</mosaic_0001>

<llo_original>
// kernel: tpu_custom_call.1
$region0: #{tpu_custom_call.1}
  #allocation0 [shape = 'u32[]', space=smem, size = 0x4, offset = 0x4, fixed_abs, tag = 'smem constant byte address 0x4 - core index']
  #allocation1 [shape = 'u32[144,128]{1,0:T(1,128)}', space=vmem, size = 0x12000, scoped, tag = 'internal scratch']
  %s0 = inlined_call_operand.hbm [shape: f32[16,512], index: 0, kind: input, shape index: {}]
  %s1 = inlined_call_operand.hbm [shape: f32[16,128], index: 1, kind: input, shape index: {}]
  %s2 = inlined_call_operand.hbm [shape: bf16[512,128], index: 2, kind: input, shape index: {}]
  %s3 = inlined_call_operand.vmem [shape: f32[1,128], index: 3, kind: input, shape index: {}]
  %s4 = inlined_call_operand.vmem [shape: f32[1,128], index: 4, kind: input, shape index: {}]
  %s5 = inlined_call_operand.vmem [shape: f32[1,128], index: 5, kind: input, shape index: {}]
  %s6 = inlined_call_operand.hbm [shape: f32[16,128], index: 6, kind: output, shape index: {}]
  %s7 = sld [smem:[#allocation0]]
  $region46: #{tpu_custom_call.1} parent=0
    _
  %s9 = ssub.s32 1, %s7
  %s10 = scalar_select 0, %s9, %s7
  $region1: #{tpu_custom_call.1} parent=0
    #allocation2 [shape = 'u8[32768]{0}', space=vmem, size = 0x8000, scoped, tag = 'input window, operand 0, single buffered']
    #allocation3 [shape = 's32[1]{0}', space=sflag, size = 0x4, scoped, tag = 'scoped memory for tpu_custom_call.1']
    #allocation4 [shape = 's32[1]{0}', space=sflag, size = 0x4, scoped, tag = 'scoped memory for tpu_custom_call.1']
    #allocation5 [shape = 'u8[8192]{0}', space=vmem, size = 0x2000, scoped, tag = 'input window, operand 1, single buffered']
    #allocation6 [shape = 's32[1]{0}', space=sflag, size = 0x4, scoped, tag = 'scoped memory for tpu_custom_call.1']
    #allocation7 [shape = 'u8[131072]{0}', space=vmem, size = 0x20000, scoped, tag = 'input window, operand 2, single buffered']
    #allocation8 [shape = 'u8[8192]{0}', space=vmem, size = 0x2000, scoped, tag = 'output window, operand 0, single buffered']
    %11 = vsyncpa [#allocation3], 0
    %12 = vsyncpa [#allocation6], 0
    %13 = vsyncpa [#allocation4], 0
    // Predicated region
    $region2: #{tpu_custom_call.1} parent=1 // pred_check
      _
    $region3: #{tpu_custom_call.1} parent=1 // pred_check_branch
      %15 = sbr.rel (0) target = $region5
    $region4: #{tpu_custom_call.1} parent=1 // pred_region
      %s17 = ssub.s32 1024, 1024
      %18 = vsyncadd [#allocation3], %s17
      %s19 = sshll.u32 [#allocation2], 4
      %s20 = int_to_ptr.vmem [resolvable:$true] %s19
      %25 = dma.hbm_to_vmem [thread:$0]  %s0, 1024, %s20, [#allocation3], 512, 512, 32
    $region5: #{tpu_custom_call.1} parent=1 // pred_fallthru
      _
    // Predicated region
    $region6: #{tpu_custom_call.1} parent=1 // pred_check
      _
    $region7: #{tpu_custom_call.1} parent=1 // pred_check_branch
      %27 = sbr.rel (0) target = $region9
    $region8: #{tpu_custom_call.1} parent=1 // pred_region
      %s29 = ssub.s32 256, 256
      %30 = vsyncadd [#allocation6], %s29
      %s31 = sshll.u32 [#allocation5], 4
      %s32 = int_to_ptr.vmem [resolvable:$true] %s31
      %37 = dma.hbm_to_vmem [thread:$0]  %s1, 256, %s32, [#allocation6], 128, 128, 8
    $region9: #{tpu_custom_call.1} parent=1 // pred_fallthru
      _
    // Predicated region
    $region10: #{tpu_custom_call.1} parent=1 // pred_check
      _
    $region11: #{tpu_custom_call.1} parent=1 // pred_check_branch
      %39 = sbr.rel (0) target = $region13
    $region12: #{tpu_custom_call.1} parent=1 // pred_region
      %s41 = ssub.s32 4096, 4096
      %42 = vsyncadd [#allocation6], %s41
      %s43 = sshll.u32 [#allocation7], 4
      %s44 = int_to_ptr.vmem [resolvable:$true] %s43
      %49 = dma.hbm_to_vmem [thread:$0]  %s2, 4096, %s44, [#allocation6], 64, 64, 4
    $region13: #{tpu_custom_call.1} parent=1 // pred_fallthru
      _
    // Predicated region
    $region14: #{tpu_custom_call.1} parent=1 // pred_check
      _
    $region15: #{tpu_custom_call.1} parent=1 // pred_check_branch
      %51 = sbr.rel (0) target = $region17
    $region16: #{tpu_custom_call.1} parent=1 // pred_region
      _
    $region17: #{tpu_custom_call.1} parent=1 // pred_fallthru
      _
    // Predicated region
    $region18: #{tpu_custom_call.1} parent=1 // pred_check
      _
    $region19: #{tpu_custom_call.1} parent=1 // pred_check_branch
      %53 = sbr.rel (0) target = $region21
    $region20: #{tpu_custom_call.1} parent=1 // pred_region
      _
    $region21: #{tpu_custom_call.1} parent=1 // pred_fallthru
      _
    // Predicated region
    $region22: #{tpu_custom_call.1} parent=1 // pred_check
      _
    $region23: #{tpu_custom_call.1} parent=1 // pred_check_branch
      %55 = sbr.rel (0) target = $region25
    $region24: #{tpu_custom_call.1} parent=1 // pred_region
      _
    $region25: #{tpu_custom_call.1} parent=1 // pred_fallthru
      _
    // Predicated region
    $region26: #{tpu_custom_call.1} parent=1 // pred_check
      _
    $region27: #{tpu_custom_call.1} parent=1 // pred_check_branch
      %57 = sbr.rel (0) target = $region29
    $region28: #{tpu_custom_call.1} parent=1 // pred_region
      %58 = dma.done [#allocation3], 1024
    $region29: #{tpu_custom_call.1} parent=1 // pred_fallthru
      _
    // Predicated region
    $region30: #{tpu_custom_call.1} parent=1 // pred_check
      _
    $region31: #{tpu_custom_call.1} parent=1 // pred_check_branch
      %60 = sbr.rel (0) target = $region33
    $region32: #{tpu_custom_call.1} parent=1 // pred_region
      %61 = dma.done [#allocation6], 256
    $region33: #{tpu_custom_call.1} parent=1 // pred_fallthru
      _
    // Predicated region
    $region34: #{tpu_custom_call.1} parent=1 // pred_check
      _
    $region35: #{tpu_custom_call.1} parent=1 // pred_check_branch
      %63 = sbr.rel (0) target = $region37
    $region36: #{tpu_custom_call.1} parent=1 // pred_region
      %64 = dma.done [#allocation6], 4096
    $region37: #{tpu_custom_call.1} parent=1 // pred_fallthru
      _
    %v66 = vld [vmem:[#allocation2] sm:$0xff]
    %v67 = vld [vmem:[#allocation2 + $0x8] sm:$0xff]
    %v68 = vld [vmem:[#allocation2 + $0x10] sm:$0xff]
    %v69 = vld [vmem:[#allocation2 + $0x18] sm:$0xff]
    %v70 = vld [vmem:[#allocation2 + $0x20] sm:$0xff]
    %v71 = vld [vmem:[#allocation2 + $0x28] sm:$0xff]
    %v72 = vld [vmem:[#allocation2 + $0x30] sm:$0xff]
    %v73 = vld [vmem:[#allocation2 + $0x38] sm:$0xff]
    %v74 = vpack.c.bf16 %v70, %v66
    %v75 = vpack.c.bf16 %v71, %v67
    %v76 = vpack.c.bf16 %v72, %v68
    %v77 = vpack.c.bf16 %v73, %v69
    %v78 = vld [vmem:[#allocation7] sm:$0xf]
    %v79 = vld [vmem:[#allocation7 + $0x4] sm:$0xf]
    %v80 = vld [vmem:[#allocation7 + $0x8] sm:$0xf]
    %v81 = vld [vmem:[#allocation7 + $0xc] sm:$0xf]
    %v82 = vld [vmem:[#allocation7 + $0x10] sm:$0xf]
    %v83 = vld [vmem:[#allocation7 + $0x14] sm:$0xf]
    %v84 = vld [vmem:[#allocation7 + $0x18] sm:$0xf]
    %v85 = vld [vmem:[#allocation7 + $0x1c] sm:$0xf]
    %v86 = vld [vmem:[#allocation7 + $0x20] sm:$0xf]
    %v87 = vld [vmem:[#allocation7 + $0x24] sm:$0xf]
    %v88 = vld [vmem:[#allocation7 + $0x28] sm:$0xf]
    %v89 = vld [vmem:[#allocation7 + $0x2c] sm:$0xf]
    %v90 = vld [vmem:[#allocation7 + $0x30] sm:$0xf]
    %v91 = vld [vmem:[#allocation7 + $0x34] sm:$0xf]
    %v92 = vld [vmem:[#allocation7 + $0x38] sm:$0xf]
    %v93 = vld [vmem:[#allocation7 + $0x3c] sm:$0xf]
    %v94 = vld [vmem:[#allocation7 + $0x40] sm:$0xf]
    %v95 = vld [vmem:[#allocation7 + $0x44] sm:$0xf]
    %v96 = vld [vmem:[#allocation7 + $0x48] sm:$0xf]
    %v97 = vld [vmem:[#allocation7 + $0x4c] sm:$0xf]
    %v98 = vld [vmem:[#allocation7 + $0x50] sm:$0xf]
    %v99 = vld [vmem:[#allocation7 + $0x54] sm:$0xf]
    %v100 = vld [vmem:[#allocation7 + $0x58] sm:$0xf]
    %v101 = vld [vmem:[#allocation7 + $0x5c] sm:$0xf]
    %v102 = vld [vmem:[#allocation7 + $0x60] sm:$0xf]
    %v103 = vld [vmem:[#allocation7 + $0x64] sm:$0xf]
    %v104 = vld [vmem:[#allocation7 + $0x68] sm:$0xf]
    %v105 = vld [vmem:[#allocation7 + $0x6c] sm:$0xf]
    %v106 = vld [vmem:[#allocation7 + $0x70] sm:$0xf]
    %v107 = vld [vmem:[#allocation7 + $0x74] sm:$0xf]
    %v108 = vld [vmem:[#allocation7 + $0x78] sm:$0xf]
    %v109 = vld [vmem:[#allocation7 + $0x7c] sm:$0xf]
    %v110 = vld [vmem:[#allocation7 + $0x80] sm:$0xf]
    %v111 = vld [vmem:[#allocation7 + $0x84] sm:$0xf]
    %v112 = vld [vmem:[#allocation7 + $0x88] sm:$0xf]
    %v113 = vld [vmem:[#allocation7 + $0x8c] sm:$0xf]
    %v114 = vld [vmem:[#allocation7 + $0x90] sm:$0xf]
    %v115 = vld [vmem:[#allocation7 + $0x94] sm:$0xf]
    %v116 = vld [vmem:[#allocation7 + $0x98] sm:$0xf]
    %v117 = vld [vmem:[#allocation7 + $0x9c] sm:$0xf]
    %v118 = vld [vmem:[#allocation7 + $0xa0] sm:$0xf]
    %v119 = vld [vmem:[#allocation7 + $0xa4] sm:$0xf]
    %v120 = vld [vmem:[#allocation7 + $0xa8] sm:$0xf]
    %v121 = vld [vmem:[#allocation7 + $0xac] sm:$0xf]
    %v122 = vld [vmem:[#allocation7 + $0xb0] sm:$0xf]
    %v123 = vld [vmem:[#allocation7 + $0xb4] sm:$0xf]
    %v124 = vld [vmem:[#allocation7 + $0xb8] sm:$0xf]
    %v125 = vld [vmem:[#allocation7 + $0xbc] sm:$0xf]
    %v126 = vld [vmem:[#allocation7 + $0xc0] sm:$0xf]
    %v127 = vld [vmem:[#allocation7 + $0xc4] sm:$0xf]
    %v128 = vld [vmem:[#allocation7 + $0xc8] sm:$0xf]
    %v129 = vld [vmem:[#allocation7 + $0xcc] sm:$0xf]
    %v130 = vld [vmem:[#allocation7 + $0xd0] sm:$0xf]
    %v131 = vld [vmem:[#allocation7 + $0xd4] sm:$0xf]
    %v132 = vld [vmem:[#allocation7 + $0xd8] sm:$0xf]
    %v133 = vld [vmem:[#allocation7 + $0xdc] sm:$0xf]
    %v134 = vld [vmem:[#allocation7 + $0xe0] sm:$0xf]
    %v135 = vld [vmem:[#allocation7 + $0xe4] sm:$0xf]
    %v136 = vld [vmem:[#allocation7 + $0xe8] sm:$0xf]
    %v137 = vld [vmem:[#allocation7 + $0xec] sm:$0xf]
    %v138 = vld [vmem:[#allocation7 + $0xf0] sm:$0xf]
    %v139 = vld [vmem:[#allocation7 + $0xf4] sm:$0xf]
    %v140 = vld [vmem:[#allocation7 + $0xf8] sm:$0xf]
    %v141 = vld [vmem:[#allocation7 + $0xfc] sm:$0xf]
    %v142 = vld [vmem:[%s3] sm:$0x1]
    %v144 = vlaneseq
    %v145 = vshrl.u32 %v144, 7
    %v146 = vsub.s32 0, %v145
    %v147 = vrot.slane %v142, %v146
    %v213 = vunpack.c.l.b16 %v78
    %v214 = vunpack.c.l.b16 %v79
    %v215 = vunpack.c.l.b16 %v80
    %v216 = vunpack.c.l.b16 %v81
    %v217 = vunpack.c.l.b16 %v82
    %v218 = vunpack.c.l.b16 %v83
    %v219 = vunpack.c.l.b16 %v84
    %v220 = vunpack.c.l.b16 %v85
    %v221 = vunpack.c.l.b16 %v86
    %v222 = vunpack.c.l.b16 %v87
    %v223 = vunpack.c.l.b16 %v88
    %v224 = vunpack.c.l.b16 %v89
    %v225 = vunpack.c.l.b16 %v90
    %v226 = vunpack.c.l.b16 %v91
    %v227 = vunpack.c.l.b16 %v92
    %v228 = vunpack.c.l.b16 %v93
    %v229 = vunpack.c.l.b16 %v94
    %v230 = vunpack.c.l.b16 %v95
    %v231 = vunpack.c.l.b16 %v96
    %v232 = vunpack.c.l.b16 %v97
    %v233 = vunpack.c.l.b16 %v98
    %v234 = vunpack.c.l.b16 %v99
    %v235 = vunpack.c.l.b16 %v100
    %v236 = vunpack.c.l.b16 %v101
    %v237 = vunpack.c.l.b16 %v102
    %v238 = vunpack.c.l.b16 %v103
    %v239 = vunpack.c.l.b16 %v104
    %v240 = vunpack.c.l.b16 %v105
    %v241 = vunpack.c.l.b16 %v106
    %v242 = vunpack.c.l.b16 %v107
    %v243 = vunpack.c.l.b16 %v108
    %v244 = vunpack.c.l.b16 %v109
    %v245 = vunpack.c.l.b16 %v110
    %v246 = vunpack.c.l.b16 %v111
    %v247 = vunpack.c.l.b16 %v112
    %v248 = vunpack.c.l.b16 %v113
    %v249 = vunpack.c.l.b16 %v114
    %v250 = vunpack.c.l.b16 %v115
    %v251 = vunpack.c.l.b16 %v116
    %v252 = vunpack.c.l.b16 %v117
    %v253 = vunpack.c.l.b16 %v118
    %v254 = vunpack.c.l.b16 %v119
    %v255 = vunpack.c.l.b16 %v120
    %v256 = vunpack.c.l.b16 %v121
    %v257 = vunpack.c.l.b16 %v122
    %v258 = vunpack.c.l.b16 %v123
    %v259 = vunpack.c.l.b16 %v124
    %v260 = vunpack.c.l.b16 %v125
    %v261 = vunpack.c.l.b16 %v126
    %v262 = vunpack.c.l.b16 %v127
    %v263 = vunpack.c.l.b16 %v128
    %v264 = vunpack.c.l.b16 %v129
    %v265 = vunpack.c.l.b16 %v130
    %v266 = vunpack.c.l.b16 %v131
    %v267 = vunpack.c.l.b16 %v132
    %v268 = vunpack.c.l.b16 %v133
    %v269 = vunpack.c.l.b16 %v134
    %v270 = vunpack.c.l.b16 %v135
    %v271 = vunpack.c.l.b16 %v136
    %v272 = vunpack.c.l.b16 %v137
    %v273 = vunpack.c.l.b16 %v138
    %v274 = vunpack.c.l.b16 %v139
    %v275 = vunpack.c.l.b16 %v140
    %v276 = vunpack.c.l.b16 %v141
    %v277 = vpack.c.b16 %v214, %v213
    %v278 = vpack.c.b16 %v216, %v215
    %v279 = vpack.c.b16 %v218, %v217
    %v280 = vpack.c.b16 %v220, %v219
    %v281 = vpack.c.b16 %v222, %v221
    %v282 = vpack.c.b16 %v224, %v223
    %v283 = vpack.c.b16 %v226, %v225
    %v284 = vpack.c.b16 %v228, %v227
    %v285 = vpack.c.b16 %v230, %v229
    %v286 = vpack.c.b16 %v232, %v231
    %v287 = vpack.c.b16 %v234, %v233
    %v288 = vpack.c.b16 %v236, %v235
    %v289 = vpack.c.b16 %v238, %v237
    %v290 = vpack.c.b16 %v240, %v239
    %v291 = vpack.c.b16 %v242, %v241
    %v292 = vpack.c.b16 %v244, %v243
    %v293 = vpack.c.b16 %v246, %v245
    %v294 = vpack.c.b16 %v248, %v247
    %v295 = vpack.c.b16 %v250, %v249
    %v296 = vpack.c.b16 %v252, %v251
    %v297 = vpack.c.b16 %v254, %v253
    %v298 = vpack.c.b16 %v256, %v255
    %v299 = vpack.c.b16 %v258, %v257
    %v300 = vpack.c.b16 %v260, %v259
    %v301 = vpack.c.b16 %v262, %v261
    %v302 = vpack.c.b16 %v264, %v263
    %v303 = vpack.c.b16 %v266, %v265
    %v304 = vpack.c.b16 %v268, %v267
    %v305 = vpack.c.b16 %v270, %v269
    %v306 = vpack.c.b16 %v272, %v271
    %v307 = vpack.c.b16 %v274, %v273
    %v308 = vpack.c.b16 %v276, %v275
    %341 = vmatprep.subr.bf16.mxu0 0
    %342 = vmatpush1.bf16.msra.mxu0 %v277
    %343 = vmatprep.subr.bf16.mxu0 0
    %344 = vmatpush1.bf16.msra.mxu0 %v278
    %345 = vmatprep.subr.bf16.mxu0 0
    %346 = vmatpush1.bf16.msra.mxu0 %v279
    %347 = vmatprep.subr.bf16.mxu0 0
    %348 = vmatpush1.bf16.msra.mxu0 %v280
    %349 = vmatprep.subr.bf16.mxu0 0
    %350 = vmatpush1.bf16.msra.mxu0 %v281
    %351 = vmatprep.subr.bf16.mxu0 0
    %352 = vmatpush1.bf16.msra.mxu0 %v282
    %353 = vmatprep.subr.bf16.mxu0 0
    %354 = vmatpush1.bf16.msra.mxu0 %v283
    %355 = vmatprep.subr.bf16.mxu0 0
    %356 = vmatpush1.bf16.msra.mxu0 %v284
    %357 = vmatprep.subr.bf16.mxu0 0
    %358 = vmatpush1.bf16.msra.mxu0 %v285
    %359 = vmatprep.subr.bf16.mxu0 0
    %360 = vmatpush1.bf16.msra.mxu0 %v286
    %361 = vmatprep.subr.bf16.mxu0 0
    %362 = vmatpush1.bf16.msra.mxu0 %v287
    %363 = vmatprep.subr.bf16.mxu0 0
    %364 = vmatpush1.bf16.msra.mxu0 %v288
    %365 = vmatprep.subr.bf16.mxu0 0
    %366 = vmatpush1.bf16.msra.mxu0 %v289
    %367 = vmatprep.subr.bf16.mxu0 0
    %368 = vmatpush1.bf16.msra.mxu0 %v290
    %369 = vmatprep.subr.bf16.mxu0 0
    %370 = vmatpush1.bf16.msra.mxu0 %v291
    %371 = vmatprep.subr.bf16.mxu0 0
    %372 = vmatpush1.bf16.msra.mxu0 %v292
    %373 = vmatprep.mubr.bf16.mxu0 %v75
    %374 = vmatmul.mubr.bf16.gmra.mrb[0].mxu0 %v74
    %v375 = vpop.f32.mrb[0].mxu0
    %v376 = vadd.f32 %v147, %v375
    %v377 = vpop.f32.mrb[0].mxu0
    %v378 = vpop.f32.mrb[0].mxu0
    %v379 = vadd.f32 %v147, %v378
    %v380 = vpop.f32.mrb[0].mxu0
    %381 = vdwg.mxu0
    %382 = vmatprep.subr.bf16.mxu0 0
    %383 = vmatpush1.bf16.msra.mxu0 %v293
    %384 = vmatprep.subr.bf16.mxu0 0
    %385 = vmatpush1.bf16.msra.mxu0 %v294
    %386 = vmatprep.subr.bf16.mxu0 0
    %387 = vmatpush1.bf16.msra.mxu0 %v295
    %388 = vmatprep.subr.bf16.mxu0 0
    %389 = vmatpush1.bf16.msra.mxu0 %v296
    %390 = vmatprep.subr.bf16.mxu0 0
    %391 = vmatpush1.bf16.msra.mxu0 %v297
    %392 = vmatprep.subr.bf16.mxu0 0
    %393 = vmatpush1.bf16.msra.mxu0 %v298
    %394 = vmatprep.subr.bf16.mxu0 0
    %395 = vmatpush1.bf16.msra.mxu0 %v299
    %396 = vmatprep.subr.bf16.mxu0 0
    %397 = vmatpush1.bf16.msra.mxu0 %v300
    %398 = vmatprep.subr.bf16.mxu0 0
    %399 = vmatpush1.bf16.msra.mxu0 %v301
    %400 = vmatprep.subr.bf16.mxu0 0
    %401 = vmatpush1.bf16.msra.mxu0 %v302
    %402 = vmatprep.subr.bf16.mxu0 0
    %403 = vmatpush1.bf16.msra.mxu0 %v303
    %404 = vmatprep.subr.bf16.mxu0 0
    %405 = vmatpush1.bf16.msra.mxu0 %v304
    %406 = vmatprep.subr.bf16.mxu0 0
    %407 = vmatpush1.bf16.msra.mxu0 %v305
    %408 = vmatprep.subr.bf16.mxu0 0
    %409 = vmatpush1.bf16.msra.mxu0 %v306
    %410 = vmatprep.subr.bf16.mxu0 0
    %411 = vmatpush1.bf16.msra.mxu0 %v307
    %412 = vmatprep.subr.bf16.mxu0 0
    %413 = vmatpush1.bf16.msra.mxu0 %v308
    %414 = vmatprep.mubr.bf16.mxu0 %v77
    %415 = vmatmul.mubr.bf16.gmra.mrb[0].mxu0 %v76
    %v416 = vpop.f32.mrb[0].mxu0
    %v417 = vadd.f32 %v376, %v416
    %v418 = vpop.f32.mrb[0].mxu0
    %v419 = vpop.f32.mrb[0].mxu0
    %v420 = vadd.f32 %v379, %v419
    %v421 = vpop.f32.mrb[0].mxu0
    %422 = vdwg.mxu0
    %v423 = vld [vmem:[#allocation5] sm:$0xff]
    %v424 = vld [vmem:[#allocation5 + $0x8] sm:$0xff]
    %v425 = vadd.f32 %v417, %v423
    %v426 = vadd.f32 %v420, %v424
    %427 = vadd.xlane.f32.xlu0 %v425
    %v428 = vpop.xlane.xlu0 %427
    %429 = vadd.xlane.f32.xlu0 %v426
    %v430 = vpop.xlane.xlu0 %429
    %v431 = vrcp.pop 128.0
    %v432 = vmul.f32 %v428, %v431
    %v433 = vmul.f32 %v430, %v431
    %v434 = vsub.f32 %v425, %v432
    %v435 = vsub.f32 %v426, %v433
    %v436 = vmul.f32 %v434, %v434
    %v437 = vmul.f32 %v435, %v435
    %438 = vadd.xlane.f32.xlu0 %v436
    %v439 = vpop.xlane.xlu0 %438
    %440 = vadd.xlane.f32.xlu0 %v437
    %v441 = vpop.xlane.xlu0 %440
    %v442 = vmul.f32 %v439, %v431
    %v443 = vmul.f32 %v441, %v431
    %v444 = vadd.f32 %v442, 1e-12
    %v445 = vadd.f32 %v443, 1e-12
    %v446 = vrsqrt.pop %v444
    %v447 = vrsqrt.pop %v445
    %v448 = vmul.f32 %v434, %v446
    %v449 = vmul.f32 %v435, %v447
    %v450 = vld [vmem:[%s4] sm:$0x1]
    %v452 = vlaneseq
    %v453 = vshrl.u32 %v452, 7
    %v454 = vsub.s32 0, %v453
    %v455 = vrot.slane %v450, %v454
    %v457 = vmul.f32 %v455, %v448
    %v458 = vmul.f32 %v455, %v449
    %v459 = vld [vmem:[%s5] sm:$0x1]
    %v461 = vlaneseq
    %v462 = vshrl.u32 %v461, 7
    %v463 = vsub.s32 0, %v462
    %v464 = vrot.slane %v459, %v463
    %v466 = vadd.f32 %v457, %v464
    %v467 = vadd.f32 %v458, %v464
    %468 = vst [vmem:[#allocation8] sm:$0xff] %v466
    %469 = vst [vmem:[#allocation8 + $0x8] sm:$0xff] %v467
    // Predicated region
    $region38: #{tpu_custom_call.1} parent=1 // pred_check
      _
    $region39: #{tpu_custom_call.1} parent=1 // pred_check_branch
      %471 = sbr.rel (0) target = $region41
    $region40: #{tpu_custom_call.1} parent=1 // pred_region
      %s473 = ssub.s32 256, 256
      %474 = vsyncadd [#allocation4], %s473
      %s475 = sshll.u32 [#allocation8], 4
      %s476 = int_to_ptr.vmem [resolvable:$true] %s475
      %481 = dma.vmem_to_hbm [thread:$0]  %s476, 256, %s6, [#allocation4], 128, 128, 8
    $region41: #{tpu_custom_call.1} parent=1 // pred_fallthru
      _
    // Predicated region
    $region42: #{tpu_custom_call.1} parent=1 // pred_check
      _
    $region43: #{tpu_custom_call.1} parent=1 // pred_check_branch
      %483 = sbr.rel (0) target = $region45
    $region44: #{tpu_custom_call.1} parent=1 // pred_region
      %484 = dma.done [#allocation4], 256
    $region45: #{tpu_custom_call.1} parent=1 // pred_fallthru
      _
    %485 = vsyncpa [#allocation3], 1
    %486 = vsyncpa [#allocation6], 1
    %487 = vsyncpa [#allocation4], 1

// kernel: tpu_custom_call.1
$region0: #{tpu_custom_call.1}
  #allocation0 [shape = 'u32[]', space=smem, size = 0x4, offset = 0x4, fixed_abs, tag = 'smem constant byte address 0x4 - core index']
  #allocation1 [shape = 'u32[144,128]{1,0:T(1,128)}', space=vmem, size = 0x12000, scoped, tag = 'internal scratch']
  %s0 = inlined_call_operand.hbm [shape: f32[16,512], index: 0, kind: input, shape index: {}]
  %s1 = inlined_call_operand.hbm [shape: f32[16,128], index: 1, kind: input, shape index: {}]
  %s2 = inlined_call_operand.hbm [shape: bf16[512,128], index: 2, kind: input, shape index: {}]
  %s3 = inlined_call_operand.vmem [shape: f32[1,128], index: 3, kind: input, shape index: {}]
  %s4 = inlined_call_operand.vmem [shape: f32[1,128], index: 4, kind: input, shape index: {}]
  %s5 = inlined_call_operand.vmem [shape: f32[1,128], index: 5, kind: input, shape index: {}]
  %s6 = inlined_call_operand.hbm [shape: f32[16,128], index: 6, kind: output, shape index: {}]
  %s7 = sld [smem:[#allocation0]]
  $region46: #{tpu_custom_call.1} parent=0
    _
  %s9 = ssub.s32 1, %s7
  %s10 = scalar_select 0, %s9, %s7
  $region1: #{tpu_custom_call.1} parent=0
    #allocation2 [shape = 'u8[32768]{0}', space=vmem, size = 0x8000, scoped, tag = 'input window, operand 0, single buffered']
    #allocation3 [shape = 's32[1]{0}', space=sflag, size = 0x4, scoped, tag = 'scoped memory for tpu_custom_call.1']
    #allocation4 [shape = 's32[1]{0}', space=sflag, size = 0x4, scoped, tag = 'scoped memory for tpu_custom_call.1']
    #allocation5 [shape = 'u8[8192]{0}', space=vmem, size = 0x2000, scoped, tag = 'input window, operand 1, single buffered']
    #allocation6 [shape = 's32[1]{0}', space=sflag, size = 0x4, scoped, tag = 'scoped memory for tpu_custom_call.1']
    #allocation7 [shape = 'u8[131072]{0}', space=vmem, size = 0x20000, scoped, tag = 'input window, operand 2, single buffered']
    #allocation8 [shape = 'u8[8192]{0}', space=vmem, size = 0x2000, scoped, tag = 'output window, operand 0, single buffered']
    %11 = vsyncpa [#allocation3], 0
    %12 = vsyncpa [#allocation6], 0
    %13 = vsyncpa [#allocation4], 0
    // Predicated region
    $region2: #{tpu_custom_call.1} parent=1 // pred_check
      _
    $region3: #{tpu_custom_call.1} parent=1 // pred_check_branch
      %15 = sbr.rel (0) target = $region5
    $region4: #{tpu_custom_call.1} parent=1 // pred_region
      %s17 = ssub.s32 1024, 1024
      %18 = vsyncadd [#allocation3], %s17
      %s19 = sshll.u32 [#allocation2], 4
      %s20 = int_to_ptr.vmem [resolvable:$true] %s19
      %25 = dma.hbm_to_vmem [thread:$0]  %s0, 1024, %s20, [#allocation3], 512, 512, 32
    $region5: #{tpu_custom_call.1} parent=1 // pred_fallthru
      _
    // Predicated region
    $region6: #{tpu_custom_call.1} parent=1 // pred_check
      _
    $region7: #{tpu_custom_call.1} parent=1 // pred_check_branch
      %27 = sbr.rel (0) target = $region9
    $region8: #{tpu_custom_call.1} parent=1 // pred_region
      %s29 = ssub.s32 256, 256
      %30 = vsyncadd [#allocation6], %s29
      %s31 = sshll.u32 [#allocation5], 4
      %s32 = int_to_ptr.vmem [resolvable:$true] %s31
      %37 = dma.hbm_to_vmem [thread:$0]  %s1, 256, %s32, [#allocation6], 128, 128, 8
    $region9: #{tpu_custom_call.1} parent=1 // pred_fallthru
      _
    // Predicated region
    $region10: #{tpu_custom_call.1} parent=1 // pred_check
      _
    $region11: #{tpu_custom_call.1} parent=1 // pred_check_branch
      %39 = sbr.rel (0) target = $region13
    $region12: #{tpu_custom_call.1} parent=1 // pred_region
      %s41 = ssub.s32 4096, 4096
      %42 = vsyncadd [#allocation6], %s41
      %s43 = sshll.u32 [#allocation7], 4
      %s44 = int_to_ptr.vmem [resolvable:$true] %s43
      %49 = dma.hbm_to_vmem [thread:$0]  %s2, 4096, %s44, [#allocation6], 64, 64, 4
    $region13: #{tpu_custom_call.1} parent=1 // pred_fallthru
      _
    // Predicated region
    $region14: #{tpu_custom_call.1} parent=1 // pred_check
      _
    $region15: #{tpu_custom_call.1} parent=1 // pred_check_branch
      %51 = sbr.rel (0) target = $region17
    $region16: #{tpu_custom_call.1} parent=1 // pred_region
      _
    $region17: #{tpu_custom_call.1} parent=1 // pred_fallthru
      _
    // Predicated region
    $region18: #{tpu_custom_call.1} parent=1 // pred_check
      _
    $region19: #{tpu_custom_call.1} parent=1 // pred_check_branch
      %53 = sbr.rel (0) target = $region21
    $region20: #{tpu_custom_call.1} parent=1 // pred_region
      _
    $region21: #{tpu_custom_call.1} parent=1 // pred_fallthru
      _
    // Predicated region
    $region22: #{tpu_custom_call.1} parent=1 // pred_check
      _
    $region23: #{tpu_custom_call.1} parent=1 // pred_check_branch
      %55 = sbr.rel (0) target = $region25
    $region24: #{tpu_custom_call.1} parent=1 // pred_region
      _
    $region25: #{tpu_custom_call.1} parent=1 // pred_fallthru
      _
    // Predicated region
    $region26: #{tpu_custom_call.1} parent=1 // pred_check
      _
    $region27: #{tpu_custom_call.1} parent=1 // pred_check_branch
      %57 = sbr.rel (0) target = $region29
    $region28: #{tpu_custom_call.1} parent=1 // pred_region
      %58 = dma.done [#allocation3], 1024
    $region29: #{tpu_custom_call.1} parent=1 // pred_fallthru
      _
    // Predicated region
    $region30: #{tpu_custom_call.1} parent=1 // pred_check
      _
    $region31: #{tpu_custom_call.1} parent=1 // pred_check_branch
      %60 = sbr.rel (0) target = $region33
    $region32: #{tpu_custom_call.1} parent=1 // pred_region
      %61 = dma.done [#allocation6], 256
    $region33: #{tpu_custom_call.1} parent=1 // pred_fallthru
      _
    // Predicated region
    $region34: #{tpu_custom_call.1} parent=1 // pred_check
      _
    $region35: #{tpu_custom_call.1} parent=1 // pred_check_branch
      %63 = sbr.rel (0) target = $region37
    $region36: #{tpu_custom_call.1} parent=1 // pred_region
      %64 = dma.done [#allocation6], 4096
    $region37: #{tpu_custom_call.1} parent=1 // pred_fallthru
      _
    %v66 = vld [vmem:[#allocation2] sm:$0xff]
    %v67 = vld [vmem:[#allocation2 + $0x8] sm:$0xff]
    %v68 = vld [vmem:[#allocation2 + $0x10] sm:$0xff]
    %v69 = vld [vmem:[#allocation2 + $0x18] sm:$0xff]
    %v70 = vld [vmem:[#allocation2 + $0x20] sm:$0xff]
    %v71 = vld [vmem:[#allocation2 + $0x28] sm:$0xff]
    %v72 = vld [vmem:[#allocation2 + $0x30] sm:$0xff]
    %v73 = vld [vmem:[#allocation2 + $0x38] sm:$0xff]
    %v74 = vpack.c.bf16 %v70, %v66
    %v75 = vpack.c.bf16 %v71, %v67
    %v76 = vpack.c.bf16 %v72, %v68
    %v77 = vpack.c.bf16 %v73, %v69
    %v78 = vld [vmem:[#allocation7] sm:$0xf]
    %v79 = vld [vmem:[#allocation7 + $0x4] sm:$0xf]
    %v80 = vld [vmem:[#allocation7 + $0x8] sm:$0xf]
    %v81 = vld [vmem:[#allocation7 + $0xc] sm:$0xf]
    %v82 = vld [vmem:[#allocation7 + $0x10] sm:$0xf]
    %v83 = vld [vmem:[#allocation7 + $0x14] sm:$0xf]
    %v84 = vld [vmem:[#allocation7 + $0x18] sm:$0xf]
    %v85 = vld [vmem:[#allocation7 + $0x1c] sm:$0xf]
    %v86 = vld [vmem:[#allocation7 + $0x20] sm:$0xf]
    %v87 = vld [vmem:[#allocation7 + $0x24] sm:$0xf]
    %v88 = vld [vmem:[#allocation7 + $0x28] sm:$0xf]
    %v89 = vld [vmem:[#allocation7 + $0x2c] sm:$0xf]
    %v90 = vld [vmem:[#allocation7 + $0x30] sm:$0xf]
    %v91 = vld [vmem:[#allocation7 + $0x34] sm:$0xf]
    %v92 = vld [vmem:[#allocation7 + $0x38] sm:$0xf]
    %v93 = vld [vmem:[#allocation7 + $0x3c] sm:$0xf]
    %v94 = vld [vmem:[#allocation7 + $0x40] sm:$0xf]
    %v95 = vld [vmem:[#allocation7 + $0x44] sm:$0xf]
    %v96 = vld [vmem:[#allocation7 + $0x48] sm:$0xf]
    %v97 = vld [vmem:[#allocation7 + $0x4c] sm:$0xf]
    %v98 = vld [vmem:[#allocation7 + $0x50] sm:$0xf]
    %v99 = vld [vmem:[#allocation7 + $0x54] sm:$0xf]
    %v100 = vld [vmem:[#allocation7 + $0x58] sm:$0xf]
    %v101 = vld [vmem:[#allocation7 + $0x5c] sm:$0xf]
    %v102 = vld [vmem:[#allocation7 + $0x60] sm:$0xf]
    %v103 = vld [vmem:[#allocation7 + $0x64] sm:$0xf]
    %v104 = vld [vmem:[#allocation7 + $0x68] sm:$0xf]
    %v105 = vld [vmem:[#allocation7 + $0x6c] sm:$0xf]
    %v106 = vld [vmem:[#allocation7 + $0x70] sm:$0xf]
    %v107 = vld [vmem:[#allocation7 + $0x74] sm:$0xf]
    %v108 = vld [vmem:[#allocation7 + $0x78] sm:$0xf]
    %v109 = vld [vmem:[#allocation7 + $0x7c] sm:$0xf]
    %v110 = vld [vmem:[#allocation7 + $0x80] sm:$0xf]
    %v111 = vld [vmem:[#allocation7 + $0x84] sm:$0xf]
    %v112 = vld [vmem:[#allocation7 + $0x88] sm:$0xf]
    %v113 = vld [vmem:[#allocation7 + $0x8c] sm:$0xf]
    %v114 = vld [vmem:[#allocation7 + $0x90] sm:$0xf]
    %v115 = vld [vmem:[#allocation7 + $0x94] sm:$0xf]
    %v116 = vld [vmem:[#allocation7 + $0x98] sm:$0xf]
    %v117 = vld [vmem:[#allocation7 + $0x9c] sm:$0xf]
    %v118 = vld [vmem:[#allocation7 + $0xa0] sm:$0xf]
    %v119 = vld [vmem:[#allocation7 + $0xa4] sm:$0xf]
    %v120 = vld [vmem:[#allocation7 + $0xa8] sm:$0xf]
    %v121 = vld [vmem:[#allocation7 + $0xac] sm:$0xf]
    %v122 = vld [vmem:[#allocation7 + $0xb0] sm:$0xf]
    %v123 = vld [vmem:[#allocation7 + $0xb4] sm:$0xf]
    %v124 = vld [vmem:[#allocation7 + $0xb8] sm:$0xf]
    %v125 = vld [vmem:[#allocation7 + $0xbc] sm:$0xf]
    %v126 = vld [vmem:[#allocation7 + $0xc0] sm:$0xf]
    %v127 = vld [vmem:[#allocation7 + $0xc4] sm:$0xf]
    %v128 = vld [vmem:[#allocation7 + $0xc8] sm:$0xf]
    %v129 = vld [vmem:[#allocation7 + $0xcc] sm:$0xf]
    %v130 = vld [vmem:[#allocation7 + $0xd0] sm:$0xf]
    %v131 = vld [vmem:[#allocation7 + $0xd4] sm:$0xf]
    %v132 = vld [vmem:[#allocation7 + $0xd8] sm:$0xf]
    %v133 = vld [vmem:[#allocation7 + $0xdc] sm:$0xf]
    %v134 = vld [vmem:[#allocation7 + $0xe0] sm:$0xf]
    %v135 = vld [vmem:[#allocation7 + $0xe4] sm:$0xf]
    %v136 = vld [vmem:[#allocation7 + $0xe8] sm:$0xf]
    %v137 = vld [vmem:[#allocation7 + $0xec] sm:$0xf]
    %v138 = vld [vmem:[#allocation7 + $0xf0] sm:$0xf]
    %v139 = vld [vmem:[#allocation7 + $0xf4] sm:$0xf]
    %v140 = vld [vmem:[#allocation7 + $0xf8] sm:$0xf]
    %v141 = vld [vmem:[#allocation7 + $0xfc] sm:$0xf]
    %v142 = vld [vmem:[%s3] sm:$0x1]
    %v144 = vlaneseq
    %v145 = vshrl.u32 %v144, 7
    %v146 = vsub.s32 0, %v145
    %v147 = vrot.slane %v142, %v146
    %v213 = vunpack.c.l.b16 %v78
    %v214 = vunpack.c.l.b16 %v79
    %v215 = vunpack.c.l.b16 %v80
    %v216 = vunpack.c.l.b16 %v81
    %v217 = vunpack.c.l.b16 %v82
    %v218 = vunpack.c.l.b16 %v83
    %v219 = vunpack.c.l.b16 %v84
    %v220 = vunpack.c.l.b16 %v85
    %v221 = vunpack.c.l.b16 %v86
    %v222 = vunpack.c.l.b16 %v87
    %v223 = vunpack.c.l.b16 %v88
    %v224 = vunpack.c.l.b16 %v89
    %v225 = vunpack.c.l.b16 %v90
    %v226 = vunpack.c.l.b16 %v91
    %v227 = vunpack.c.l.b16 %v92
    %v228 = vunpack.c.l.b16 %v93
    %v229 = vunpack.c.l.b16 %v94
    %v230 = vunpack.c.l.b16 %v95
    %v231 = vunpack.c.l.b16 %v96
    %v232 = vunpack.c.l.b16 %v97
    %v233 = vunpack.c.l.b16 %v98
    %v234 = vunpack.c.l.b16 %v99
    %v235 = vunpack.c.l.b16 %v100
    %v236 = vunpack.c.l.b16 %v101
    %v237 = vunpack.c.l.b16 %v102
    %v238 = vunpack.c.l.b16 %v103
    %v239 = vunpack.c.l.b16 %v104
    %v240 = vunpack.c.l.b16 %v105
    %v241 = vunpack.c.l.b16 %v106
    %v242 = vunpack.c.l.b16 %v107
    %v243 = vunpack.c.l.b16 %v108
    %v244 = vunpack.c.l.b16 %v109
    %v245 = vunpack.c.l.b16 %v110
    %v246 = vunpack.c.l.b16 %v111
    %v247 = vunpack.c.l.b16 %v112
    %v248 = vunpack.c.l.b16 %v113
    %v249 = vunpack.c.l.b16 %v114
    %v250 = vunpack.c.l.b16 %v115
    %v251 = vunpack.c.l.b16 %v116
    %v252 = vunpack.c.l.b16 %v117
    %v253 = vunpack.c.l.b16 %v118
    %v254 = vunpack.c.l.b16 %v119
    %v255 = vunpack.c.l.b16 %v120
    %v256 = vunpack.c.l.b16 %v121
    %v257 = vunpack.c.l.b16 %v122
    %v258 = vunpack.c.l.b16 %v123
    %v259 = vunpack.c.l.b16 %v124
    %v260 = vunpack.c.l.b16 %v125
    %v261 = vunpack.c.l.b16 %v126
    %v262 = vunpack.c.l.b16 %v127
    %v263 = vunpack.c.l.b16 %v128
    %v264 = vunpack.c.l.b16 %v129
    %v265 = vunpack.c.l.b16 %v130
    %v266 = vunpack.c.l.b16 %v131
    %v267 = vunpack.c.l.b16 %v132
    %v268 = vunpack.c.l.b16 %v133
    %v269 = vunpack.c.l.b16 %v134
    %v270 = vunpack.c.l.b16 %v135
    %v271 = vunpack.c.l.b16 %v136
    %v272 = vunpack.c.l.b16 %v137
    %v273 = vunpack.c.l.b16 %v138
    %v274 = vunpack.c.l.b16 %v139
    %v275 = vunpack.c.l.b16 %v140
    %v276 = vunpack.c.l.b16 %v141
    %v277 = vpack.c.b16 %v214, %v213
    %v278 = vpack.c.b16 %v216, %v215
    %v279 = vpack.c.b16 %v218, %v217
    %v280 = vpack.c.b16 %v220, %v219
    %v281 = vpack.c.b16 %v222, %v221
    %v282 = vpack.c.b16 %v224, %v223
    %v283 = vpack.c.b16 %v226, %v225
    %v284 = vpack.c.b16 %v228, %v227
    %v285 = vpack.c.b16 %v230, %v229
    %v286 = vpack.c.b16 %v232, %v231
    %v287 = vpack.c.b16 %v234, %v233
    %v288 = vpack.c.b16 %v236, %v235
    %v289 = vpack.c.b16 %v238, %v237
    %v290 = vpack.c.b16 %v240, %v239
    %v291 = vpack.c.b16 %v242, %v241
    %v292 = vpack.c.b16 %v244, %v243
    %v293 = vpack.c.b16 %v246, %v245
    %v294 = vpack.c.b16 %v248, %v247
    %v295 = vpack.c.b16 %v250, %v249
    %v296 = vpack.c.b16 %v252, %v251
    %v297 = vpack.c.b16 %v254, %v253
    %v298 = vpack.c.b16 %v256, %v255
    %v299 = vpack.c.b16 %v258, %v257
    %v300 = vpack.c.b16 %v260, %v259
    %v301 = vpack.c.b16 %v262, %v261
    %v302 = vpack.c.b16 %v264, %v263
    %v303 = vpack.c.b16 %v266, %v265
    %v304 = vpack.c.b16 %v268, %v267
    %v305 = vpack.c.b16 %v270, %v269
    %v306 = vpack.c.b16 %v272, %v271
    %v307 = vpack.c.b16 %v274, %v273
    %v308 = vpack.c.b16 %v276, %v275
    %341 = vmatprep.subr.bf16.mxu0 0
    %342 = vmatpush1.bf16.msra.mxu0 %v277
    %343 = vmatprep.subr.bf16.mxu0 0
    %344 = vmatpush1.bf16.msra.mxu0 %v278
    %345 = vmatprep.subr.bf16.mxu0 0
    %346 = vmatpush1.bf16.msra.mxu0 %v279
    %347 = vmatprep.subr.bf16.mxu0 0
    %348 = vmatpush1.bf16.msra.mxu0 %v280
    %349 = vmatprep.subr.bf16.mxu0 0
    %350 = vmatpush1.bf16.msra.mxu0 %v281
    %351 = vmatprep.subr.bf16.mxu0 0
    %352 = vmatpush1.bf16.msra.mxu0 %v282
    %353 = vmatprep.subr.bf16.mxu0 0
    %354 = vmatpush1.bf16.msra.mxu0 %v283
    %355 = vmatprep.subr.bf16.mxu0 0
    %356 = vmatpush1.bf16.msra.mxu0 %v284
    %357 = vmatprep.subr.bf16.mxu0 0
    %358 = vmatpush1.bf16.msra.mxu0 %v285
    %359 = vmatprep.subr.bf16.mxu0 0
    %360 = vmatpush1.bf16.msra.mxu0 %v286
    %361 = vmatprep.subr.bf16.mxu0 0
    %362 = vmatpush1.bf16.msra.mxu0 %v287
    %363 = vmatprep.subr.bf16.mxu0 0
    %364 = vmatpush1.bf16.msra.mxu0 %v288
    %365 = vmatprep.subr.bf16.mxu0 0
    %366 = vmatpush1.bf16.msra.mxu0 %v289
    %367 = vmatprep.subr.bf16.mxu0 0
    %368 = vmatpush1.bf16.msra.mxu0 %v290
    %369 = vmatprep.subr.bf16.mxu0 0
    %370 = vmatpush1.bf16.msra.mxu0 %v291
    %371 = vmatprep.subr.bf16.mxu0 0
    %372 = vmatpush1.bf16.msra.mxu0 %v292
    %373 = vmatprep.mubr.bf16.mxu0 %v75
    %374 = vmatmul.mubr.bf16.gmra.mrb[0].mxu0 %v74
    %v375 = vpop.f32.mrb[0].mxu0
    %v376 = vadd.f32 %v147, %v375
    %v377 = vpop.f32.mrb[0].mxu0
    %v378 = vpop.f32.mrb[0].mxu0
    %v379 = vadd.f32 %v147, %v378
    %v380 = vpop.f32.mrb[0].mxu0
    %381 = vdwg.mxu0
    %382 = vmatprep.subr.bf16.mxu0 0
    %383 = vmatpush1.bf16.msra.mxu0 %v293
    %384 = vmatprep.subr.bf16.mxu0 0
    %385 = vmatpush1.bf16.msra.mxu0 %v294
    %386 = vmatprep.subr.bf16.mxu0 0
    %387 = vmatpush1.bf16.msra.mxu0 %v295
    %388 = vmatprep.subr.bf16.mxu0 0
    %389 = vmatpush1.bf16.msra.mxu0 %v296
    %390 = vmatprep.subr.bf16.mxu0 0
    %391 = vmatpush1.bf16.msra.mxu0 %v297
    %392 = vmatprep.subr.bf16.mxu0 0
    %393 = vmatpush1.bf16.msra.mxu0 %v298
    %394 = vmatprep.subr.bf16.mxu0 0
    %395 = vmatpush1.bf16.msra.mxu0 %v299
    %396 = vmatprep.subr.bf16.mxu0 0
    %397 = vmatpush1.bf16.msra.mxu0 %v300
    %398 = vmatprep.subr.bf16.mxu0 0
    %399 = vmatpush1.bf16.msra.mxu0 %v301
    %400 = vmatprep.subr.bf16.mxu0 0
    %401 = vmatpush1.bf16.msra.mxu0 %v302
    %402 = vmatprep.subr.bf16.mxu0 0
    %403 = vmatpush1.bf16.msra.mxu0 %v303
    %404 = vmatprep.subr.bf16.mxu0 0
    %405 = vmatpush1.bf16.msra.mxu0 %v304
    %406 = vmatprep.subr.bf16.mxu0 0
    %407 = vmatpush1.bf16.msra.mxu0 %v305
    %408 = vmatprep.subr.bf16.mxu0 0
    %409 = vmatpush1.bf16.msra.mxu0 %v306
    %410 = vmatprep.subr.bf16.mxu0 0
    %411 = vmatpush1.bf16.msra.mxu0 %v307
    %412 = vmatprep.subr.bf16.mxu0 0
    %413 = vmatpush1.bf16.msra.mxu0 %v308
    %414 = vmatprep.mubr.bf16.mxu0 %v77
    %415 = vmatmul.mubr.bf16.gmra.mrb[0].mxu0 %v76
    %v416 = vpop.f32.mrb[0].mxu0
    %v417 = vadd.f32 %v376, %v416
    %v418 = vpop.f32.mrb[0].mxu0
    %v419 = vpop.f32.mrb[0].mxu0
    %v420 = vadd.f32 %v379, %v419
    %v421 = vpop.f32.mrb[0].mxu0
    %422 = vdwg.mxu0
    %v423 = vld [vmem:[#allocation5] sm:$0xff]
    %v424 = vld [vmem:[#allocation5 + $0x8] sm:$0xff]
    %v425 = vadd.f32 %v417, %v423
    %v426 = vadd.f32 %v420, %v424
    %427 = vadd.xlane.f32.xlu0 %v425
    %v428 = vpop.xlane.xlu0 %427
    %429 = vadd.xlane.f32.xlu0 %v426
    %v430 = vpop.xlane.xlu0 %429
    %v431 = vrcp.pop 128.0
    %v432 = vmul.f32 %v428, %v431
    %v433 = vmul.f32 %v430, %v431
    %v434 = vsub.f32 %v425, %v432
    %v435 = vsub.f32 %v426, %v433
    %v436 = vmul.f32 %v434, %v434
    %v437 = vmul.f32 %v435, %v435
    %438 = vadd.xlane.f32.xlu0 %v436
    %v439 = vpop.xlane.xlu0 %438
    %440 = vadd.xlane.f32.xlu0 %v437
    %v441 = vpop.xlane.xlu0 %440
    %v442 = vmul.f32 %v439, %v431
    %v443 = vmul.f32 %v441, %v431
    %v444 = vadd.f32 %v442, 1e-12
    %v445 = vadd.f32 %v443, 1e-12
    %v446 = vrsqrt.pop %v444
    %v447 = vrsqrt.pop %v445
    %v448 = vmul.f32 %v434, %v446
    %v449 = vmul.f32 %v435, %v447
    %v450 = vld [vmem:[%s4] sm:$0x1]
    %v452 = vlaneseq
    %v453 = vshrl.u32 %v452, 7
    %v454 = vsub.s32 0, %v453
    %v455 = vrot.slane %v450, %v454
    %v457 = vmul.f32 %v455, %v448
    %v458 = vmul.f32 %v455, %v449
    %v459 = vld [vmem:[%s5] sm:$0x1]
    %v461 = vlaneseq
    %v462 = vshrl.u32 %v461, 7
    %v463 = vsub.s32 0, %v462
    %v464 = vrot.slane %v459, %v463
    %v466 = vadd.f32 %v457, %v464
    %v467 = vadd.f32 %v458, %v464
    %468 = vst [vmem:[#allocation8] sm:$0xff] %v466
    %469 = vst [vmem:[#allocation8 + $0x8] sm:$0xff] %v467
    // Predicated region
    $region38: #{tpu_custom_call.1} parent=1 // pred_check
      _
    $region39: #{tpu_custom_call.1} parent=1 // pred_check_branch
      %471 = sbr.rel (0) target = $region41
    $region40: #{tpu_custom_call.1} parent=1 // pred_region
      %s473 = ssub.s32 256, 256
      %474 = vsyncadd [#allocation4], %s473
      %s475 = sshll.u32 [#allocation8], 4
      %s476 = int_to_ptr.vmem [resolvable:$true] %s475
      %481 = dma.vmem_to_hbm [thread:$0]  %s476, 256, %s6, [#allocation4], 128, 128, 8
    $region41: #{tpu_custom_call.1} parent=1 // pred_fallthru
      _
    // Predicated region
    $region42: #{tpu_custom_call.1} parent=1 // pred_check
      _
    $region43: #{tpu_custom_call.1} parent=1 // pred_check_branch
      %483 = sbr.rel (0) target = $region45
    $region44: #{tpu_custom_call.1} parent=1 // pred_region
      %484 = dma.done [#allocation4], 256
    $region45: #{tpu_custom_call.1} parent=1 // pred_fallthru
      _
    %485 = vsyncpa [#allocation3], 1
    %486 = vsyncpa [#allocation6], 1
    %487 = vsyncpa [#allocation4], 1

</llo_original>
